<compile_context>
chip_gen: v6e
topology: v6e:2x2x1
jax: 0.10.0
libtpu: 0.0.40
codegen_flags: <defaults>
</compile_context>

<pallas_src>
import functools

import jax
import jax.numpy as jnp
from jax import lax
from jax.experimental import pallas as pl
from jax.experimental.pallas import tpu as pltpu


def _round_up(x, m):
    return (x + m - 1) // m * m


def _chip_defaults():
    """(row_tile, exp_dtype) per TPU generation; conservative fallback."""
    try:
        kind = jax.devices()[0].device_kind.lower()
    except Exception:
        kind = ""
    old_gen = any(t in kind for t in ("v2", "v3", "v4", "v5"))
    if old_gen:
        # 4x128x128 MXU, no bf16 EUP/VPU, 16 MiB scoped-VMEM default.
        return 128, jnp.float32
    # v6e / v7x: 256x256 MXU tiles, bf16 EUP exp ~2x.
    return 256, jnp.bfloat16


def _simclr_kernel(q_ref, k_hbm, loss_ref,
                   kn_ref, k_stage_ref, col_bias_ref, col_l_ref, acc_ref, load_sem,
                   *, temperature, b_valid, dot_dtype, exp_dtype, n_chunks):
    i = pl.program_id(0)
    n_steps = pl.num_programs(0)

    tq = q_ref.shape[0]
    b_pad = kn_ref.shape[0]

    inv_t = jnp.float32(1.0 / temperature)
    eps2 = jnp.float32(1e-24)      # (1e-12)^2: torch F.normalize eps on the squared norm
    neg_big = jnp.float32(-1e30)   # exp(s + neg_big) == 0 exactly for padded columns

    # ---- one-time init: build column bias, zero accumulators, and normalize k
    #      chunk-by-chunk from HBM into the resident dot-dtype cache ----
    @pl.when(i == 0)
    def _init():
        gcol = lax.broadcasted_iota(jnp.int32, (1, b_pad), 1)
        # -1/T folded in for valid columns (fixed reference max), -1e30 kills padded
        # columns exactly -> no per-element [tq, b_pad] mask anywhere in the hot loop.
        col_bias_ref[...] = jnp.where(gcol < b_valid, -inv_t, neg_big)
        col_l_ref[...] = jnp.zeros_like(col_l_ref)
        acc_ref[...] = jnp.zeros_like(acc_ref)

        @pl.loop(0, n_chunks)
        def _load(c):
            start = pl.multiple_of(c * tq, tq)
            cp = pltpu.make_async_copy(k_hbm.at[pl.ds(start, tq), :],
                                       k_stage_ref, load_sem.at[0])
            cp.start()
            cp.wait()
            kf = k_stage_ref[...].astype(jnp.float32)
            k_inv = lax.rsqrt(jnp.maximum(jnp.sum(kf * kf, axis=1, keepdims=True), eps2))
            kn_ref[pl.ds(start, tq), :] = (kf * k_inv).astype(kn_ref.dtype)

    # ---- normalize this q row tile; fold 1/temperature into its scale ----
    qf = q_ref[...].astype(jnp.float32)                                    # [tq, D]
    q_inv = lax.rsqrt(jnp.maximum(jnp.sum(qf * qf, axis=1, keepdims=True), eps2))
    qn = qf * (q_inv * inv_t)                                              # logits scale folded

    # ---- positive-pair (diagonal) logits straight from the normalized cache ----
    row0 = pl.multiple_of(i * tq, tq)
    knd = kn_ref[pl.ds(row0, tq), :].astype(jnp.float32)                   # [tq, D]
    diag = jnp.sum(qn * knd, axis=1, keepdims=True)                        # [tq, 1]

    # ---- logits tile via NT contraction on the MXU (same layout as the reference
    #      TPU flash-attention kernel; no explicit transpose of kn) ----
    s = lax.dot_general(qn.astype(dot_dtype), kn_ref[...],
                        dimension_numbers=(((1,), (1,)), ((), ())),
                        preferred_element_type=jnp.float32)                # [tq, b_pad]

    # Single shared exp with constant reference max 1/T: |s| <= 1/T for normalized
    # embeddings (bf16 rounding can push it marginally past 1/T, harmless for a
    # fixed-max scheme -- do not "fix" it).  col_bias already carries -1/T for valid
    # columns and -1e30 for padded ones, so padded columns give exactly 0.
    e = jnp.exp((s + col_bias_ref[...]).astype(exp_dtype)).astype(jnp.float32)

    lse_row = inv_t + jnp.log(jnp.sum(e, axis=1, keepdims=True))           # [tq, 1]
    # row-CE numerator plus the "- diag" share of the column CE, combined:
    per_row = lse_row - 2.0 * diag

    # Padded q rows only exist in the last tile -> full tiles accumulate unmasked.
    @pl.when(i < n_steps - 1)
    def _accumulate():
        acc_ref[...] += jnp.sum(per_row, axis=0, keepdims=True)
        col_l_ref[...] += jnp.sum(e, axis=0, keepdims=True)

    @pl.when(i == n_steps - 1)
    def _accumulate_and_finalize():
        grow = row0 + lax.broadcasted_iota(jnp.int32, (tq, 1), 0)
        row_valid = grow < b_valid
        acc_ref[...] += jnp.sum(jnp.where(row_valid, per_row, 0.0), axis=0, keepdims=True)
        col_l_ref[...] += jnp.sum(jnp.where(row_valid, e, 0.0), axis=0, keepdims=True)

        lse_col = inv_t + jnp.log(col_l_ref[...])                          # [1, b_pad]
        gcol = lax.broadcasted_iota(jnp.int32, (1, b_pad), 1)
        col_sum = jnp.sum(jnp.where(gcol < b_valid, lse_col, 0.0), axis=1, keepdims=True)
        loss_ref[...] = jnp.float32(0.5 / b_valid) * (acc_ref[...] + col_sum)


def simclr_contrastive_loss(q, k, temperature=0.07, *,
                            row_tile=None, dot_dtype=jnp.bfloat16, exp_dtype=None):
    """q, k: [B, D] embeddings. Returns the scalar NT-Xent loss (L2-normalizes inside).

    dot_dtype=jnp.float32 gives the exact path; the default bf16 path uses bf16 MXU
    operands with f32 accumulation and (on v6e/v7x) a bf16 EUP exp.
    """
    assert q.shape == k.shape and q.ndim == 2
    # Fixed-max logsumexp needs exp(-2/T) to stay above f32 underflow.
    assert 2.0 / temperature < 85.0, "temperature too small for fixed-max logsumexp path"
    B, D = q.shape

    auto_tile, auto_exp = _chip_defaults()
    row_tile = auto_tile if row_tile is None else _round_up(max(int(row_tile), 128), 128)
    if exp_dtype is None:
        exp_dtype = (jnp.float32 if jnp.dtype(dot_dtype) == jnp.dtype(jnp.float32)
                     else auto_exp)

    b_pad = _round_up(B, 128)            # lane-dense column accumulator / MXU tiles
    tq = min(row_tile, b_pad)
    b_pad = _round_up(b_pad, tq)
    d_pad = _round_up(D, 128)            # zero-padding the contraction dim is exact

    if (b_pad, d_pad) != (B, D):
        qp = jnp.pad(q, ((0, b_pad - B), (0, d_pad - D)))
        kp = jnp.pad(k, ((0, b_pad - B), (0, d_pad - D)))
    else:
        qp, kp = q, k

    n_steps = b_pad // tq

    dot_bytes = jnp.dtype(dot_dtype).itemsize
    in_bytes = jnp.dtype(qp.dtype).itemsize
    need = (b_pad * d_pad * dot_bytes        # resident normalized-k cache
            + tq * d_pad * in_bytes          # k staging chunk (one-time load)
            + 2 * tq * d_pad * in_bytes      # q row tile (double-buffered)
            + 4 * 8 * b_pad * 4              # column bias + column accumulator (sublane-padded)
            + (1 << 20))                     # small accumulators, output, slack
    vmem_limit = min(max(int(need * 1.3) + (4 << 20), 32 << 20), 100 << 20)

    kernel = functools.partial(_simclr_kernel, temperature=float(temperature),
                               b_valid=B, dot_dtype=dot_dtype, exp_dtype=exp_dtype,
                               n_chunks=n_steps)

    out = pl.pallas_call(
        kernel,
        out_shape=jax.ShapeDtypeStruct((1, 1), jnp.float32),
        grid_spec=pltpu.PrefetchScalarGridSpec(
            num_scalar_prefetch=0,
            grid=(n_steps,),
            in_specs=[
                pl.BlockSpec((tq, d_pad), lambda i: (i, 0)),     # q row tile (pipelined)
                pl.BlockSpec(memory_space=pl.ANY),               # k stays in HBM; DMA'd once
            ],
            out_specs=pl.BlockSpec((1, 1), lambda i: (0, 0)),
            scratch_shapes=[
                pltpu.VMEM((b_pad, d_pad), dot_dtype),   # normalized k cache (resident)
                pltpu.VMEM((tq, d_pad), kp.dtype),       # k staging chunk for the one-time load
                pltpu.VMEM((1, b_pad), jnp.float32),     # column bias (-1/T valid, -1e30 padded)
                pltpu.VMEM((1, b_pad), jnp.float32),     # column sum-exp accumulator
                pltpu.VMEM((1, 1), jnp.float32),         # sum(lse_row - 2*diag) accumulator
                pltpu.SemaphoreType.DMA((1,)),           # k-load semaphore
            ],
        ),
        compiler_params=pltpu.CompilerParams(
            # The row-tile axis carries the column-logsumexp reduction -> sequential.
            # TODO(synk): per-core partials to use both v7x TensorCores.
            dimension_semantics=("arbitrary",),
            vmem_limit_bytes=vmem_limit,
        ),
    )(qp, kp)
    return out[0, 0]


def _reference_loss(q, k, temperature=0.07):
    qn = q / jnp.maximum(jnp.linalg.norm(q, axis=1, keepdims=True), 1e-12)
    kn = k / jnp.maximum(jnp.linalg.norm(k, axis=1, keepdims=True), 1e-12)
    s = jnp.dot(qn, kn.T, precision=jax.lax.Precision.HIGHEST) / temperature
    B = s.shape[0]
    idx = jnp.arange(B)
    lse_row = jax.scipy.special.logsumexp(s, axis=1)
    lse_col = jax.scipy.special.logsumexp(s, axis=0)
    diag = s[idx, idx]
    return 0.5 * (jnp.mean(lse_row - diag) + jnp.mean(lse_col - diag))


if __name__ == "__main__":
    # Small shapes from the module spec: two views' embeddings, [B, D].
    kq, kk = jax.random.split(jax.random.PRNGKey(0))
    B, D = 8, 32
    q = jax.random.normal(kq, (B, D), dtype=jnp.float32)
    k = jax.random.normal(kk, (B, D), dtype=jnp.float32)
    ref = _reference_loss(q, k, temperature=0.07)

    # Exact path: f32 MXU operands + f32 exp.
    loss_f32 = simclr_contrastive_loss(q, k, temperature=0.07, dot_dtype=jnp.float32)
    jax.block_until_ready(loss_f32)
    assert jnp.allclose(loss_f32, ref, atol=2e-3, rtol=2e-3), (loss_f32, ref)

    # Fast path (default): bf16 MXU operands, f32 accumulation, bf16 exp on v6e/v7x.
    loss_fast = simclr_contrastive_loss(q, k, temperature=0.07)
    jax.block_until_ready(loss_fast)
    assert jnp.allclose(loss_fast, ref, atol=5e-2, rtol=5e-2), (loss_fast, ref)

    # Multi-tile, padded-batch case: exercises the grid-carried accumulators, the
    # one-time chunked k load, and the last-tile row masking.
    kq2, kk2 = jax.random.split(jax.random.PRNGKey(1))
    q2 = jax.random.normal(kq2, (300, 48), dtype=jnp.float32)
    k2 = jax.random.normal(kk2, (300, 48), dtype=jnp.float32)
    ref2 = _reference_loss(q2, k2, temperature=0.07)
    loss2 = simclr_contrastive_loss(q2, k2, temperature=0.07,
                                    dot_dtype=jnp.float32, row_tile=128)
    jax.block_until_ready(loss2)
    assert jnp.allclose(loss2, ref2, atol=2e-3, rtol=2e-3), (loss2, ref2)

    print("KERNEL_OK")
</pallas_src>

<mosaic_0001>
module attributes {stable_mosaic.version = 11 : i64} {
  func.func @_simclr_kernel(%arg0: i32, %arg1: memref<128x128xf32, #tpu.memory_space<vmem>>, %arg2: memref<128x128xf32, #tpu.memory_space<any>>, %arg3: memref<1x1xf32, #tpu.memory_space<vmem>>, %arg4: memref<128x128xf32, #tpu.memory_space<vmem>>, %arg5: memref<128x128xf32, #tpu.memory_space<vmem>>, %arg6: memref<1x128xf32, #tpu.memory_space<vmem>>, %arg7: memref<1x128xf32, #tpu.memory_space<vmem>>, %arg8: memref<1x1xf32, #tpu.memory_space<vmem>>, %arg9: memref<1x!tpu.dma_semaphore, #tpu.memory_space<semaphore_mem>>) attributes {dimension_semantics = [#tpu.dimension_semantics<arbitrary>], iteration_bounds = array<i64: 1>, scalar_prefetch = 0 : i64, scratch_operands = 6 : i64, tpu.core_type = #tpu.core_type<tc>, window_params = [{transform_indices = @transform_0, window_bounds = array<i64: 128, 128>}, {}, {pipeline_mode = #tpu.pipeline_mode<synchronous>, transform_indices = @transform_2, window_bounds = array<i64: 1, 1>}]} {
    %c0_i32 = arith.constant 0 : i32
    %0 = arith.cmpi eq, %arg0, %c0_i32 : i32
    %1 = arith.extui %0 : i1 to i32
    %cst = arith.constant 14.2857141 : f32
    %cst_0 = arith.constant -1.000000e+30 : f32
    %cst_1 = arith.constant 1.000000e-24 : f32
    %c0_i32_2 = arith.constant 0 : i32
    %2 = arith.cmpi ne, %1, %c0_i32_2 : i32
    scf.if %2 {
      %41 = tpu.iota {dimensions = array<i32: 1>} : vector<1x128xi32>
      %c8_i32 = arith.constant 8 : i32
      %42 = vector.broadcast %c8_i32 : i32 to vector<1x128xi32>
      %43 = arith.cmpi slt, %41, %42 : vector<1x128xi32>
      %cst_22 = arith.constant 0.000000e+00 : f32
      %44 = arith.subf %cst_22, %cst : f32
      %45 = vector.broadcast %44 : f32 to vector<1x128xf32>
      %46 = vector.broadcast %cst_0 : f32 to vector<1x128xf32>
      %47 = arith.select %43, %45, %46 : vector<1x128xi1>, vector<1x128xf32>
      %c0_23 = arith.constant 0 : index
      %c0_24 = arith.constant 0 : index
      %48 = vector.load %arg6[%c0_23, %c0_24] : memref<1x128xf32, #tpu.memory_space<vmem>>, vector<1x128xf32>
      tpu.vector_store %arg6[%c0_23, %c0_24], %47 {strides = array<i32>} : memref<1x128xf32, #tpu.memory_space<vmem>>, vector<1x128xf32>,
      %cst_25 = arith.constant 0.000000e+00 : f32
      %49 = vector.broadcast %cst_25 : f32 to vector<1x128xf32>
      %c0_26 = arith.constant 0 : index
      %c0_27 = arith.constant 0 : index
      %50 = vector.load %arg7[%c0_26, %c0_27] : memref<1x128xf32, #tpu.memory_space<vmem>>, vector<1x128xf32>
      tpu.vector_store %arg7[%c0_26, %c0_27], %49 {strides = array<i32>} : memref<1x128xf32, #tpu.memory_space<vmem>>, vector<1x128xf32>,
      %cst_28 = arith.constant 0.000000e+00 : f32
      %51 = vector.broadcast %cst_28 : f32 to vector<1x1xf32>
      %c0_29 = arith.constant 0 : index
      %c0_30 = arith.constant 0 : index
      %52 = vector.load %arg8[%c0_29, %c0_30] : memref<1x1xf32, #tpu.memory_space<vmem>>, vector<1x1xf32>
      tpu.vector_store %arg8[%c0_29, %c0_30], %51 {strides = array<i32>} : memref<1x1xf32, #tpu.memory_space<vmem>>, vector<1x1xf32>,
      %c0_i32_31 = arith.constant 0 : i32
      %c1_i32 = arith.constant 1 : i32
      %53 = arith.muli %c0_i32_31, %c1_i32 : i32
      %c0_i32_32 = arith.constant 0 : i32
      %54 = arith.addi %c0_i32_32, %53 : i32
      %c128_i32_33 = arith.constant 128 : i32
      %55 = arith.muli %54, %c128_i32_33 : i32
      %56 = tpu.assume_multiple %55, 128 : i32
      %c0_i32_34 = arith.constant 0 : i32
      %c0_i32_35 = arith.constant 0 : i32
      %57 = tpu.memref_slice %arg2[%56, %c0_i32_35] : memref<128x128xf32, #tpu.memory_space<any>> -> memref<128x128xf32, #tpu.memory_space<any>>
      %58 = tpu.memref_slice %arg9[%c0_i32_34] : memref<1x!tpu.dma_semaphore, #tpu.memory_space<semaphore_mem>> -> memref<1x!tpu.dma_semaphore, #tpu.memory_space<semaphore_mem>>
      %59 = tpu.memref_squeeze %58 : memref<1x!tpu.dma_semaphore, #tpu.memory_space<semaphore_mem>> -> memref<!tpu.dma_semaphore, #tpu.memory_space<semaphore_mem>>
      tpu.enqueue_dma source(%57 : memref<128x128xf32, #tpu.memory_space<any>>) target(%arg5 : memref<128x128xf32, #tpu.memory_space<vmem>>) target_semaphore(%59 : memref<!tpu.dma_semaphore, #tpu.memory_space<semaphore_mem>>)
      %c0_i32_36 = arith.constant 0 : i32
      %c0_i32_37 = arith.constant 0 : i32
      %60 = tpu.memref_slice %arg2[%56, %c0_i32_37] : memref<128x128xf32, #tpu.memory_space<any>> -> memref<128x128xf32, #tpu.memory_space<any>>
      %61 = tpu.memref_slice %arg9[%c0_i32_36] : memref<1x!tpu.dma_semaphore, #tpu.memory_space<semaphore_mem>> -> memref<1x!tpu.dma_semaphore, #tpu.memory_space<semaphore_mem>>
      %62 = tpu.memref_squeeze %61 : memref<1x!tpu.dma_semaphore, #tpu.memory_space<semaphore_mem>> -> memref<!tpu.dma_semaphore, #tpu.memory_space<semaphore_mem>>
      tpu.wait_dma2 semaphore(%62 : memref<!tpu.dma_semaphore, #tpu.memory_space<semaphore_mem>>) src(%60 : memref<128x128xf32, #tpu.memory_space<any>>) dst(%arg5 : memref<128x128xf32, #tpu.memory_space<vmem>>)
      %c0_38 = arith.constant 0 : index
      %c0_39 = arith.constant 0 : index
      %63 = vector.load %arg5[%c0_38, %c0_39] : memref<128x128xf32, #tpu.memory_space<vmem>>, vector<128x128xf32>
      %64 = arith.mulf %63, %63 : vector<128x128xf32>
      %cst_40 = arith.constant dense<0.000000e+00> : vector<128xf32>
      %65 = vector.multi_reduction <add>, %64, %cst_40 [1] : vector<128x128xf32> to vector<128xf32>
      %66 = vector.shape_cast %65 : vector<128xf32> to vector<128x1xf32>
      %67 = vector.broadcast %cst_1 : f32 to vector<128x1xf32>
      %68 = arith.maximumf %66, %67 : vector<128x1xf32>
      %69 = math.rsqrt %68 : vector<128x1xf32>
      %70 = vector.broadcast %69 : vector<128x1xf32> to vector<128x128xf32>
      %71 = arith.mulf %63, %70 : vector<128x128xf32>
      %72 = arith.index_cast %56 : i32 to index
      %c0_41 = arith.constant 0 : index
      %73 = vector.load %arg4[%72, %c0_41] : memref<128x128xf32, #tpu.memory_space<vmem>>, vector<128x128xf32>
      tpu.vector_store %arg4[%72, %c0_41], %71 {strides = array<i32>} : memref<128x128xf32, #tpu.memory_space<vmem>>, vector<128x128xf32>,
      %c1_i32_42 = arith.constant 1 : i32
    } else {
    }
    %c0 = arith.constant 0 : index
    %c0_3 = arith.constant 0 : index
    %3 = vector.load %arg1[%c0, %c0_3] : memref<128x128xf32, #tpu.memory_space<vmem>>, vector<128x128xf32>
    %4 = arith.mulf %3, %3 : vector<128x128xf32>
    %cst_4 = arith.constant dense<0.000000e+00> : vector<128xf32>
    %5 = vector.multi_reduction <add>, %4, %cst_4 [1] : vector<128x128xf32> to vector<128xf32>
    %6 = vector.shape_cast %5 : vector<128xf32> to vector<128x1xf32>
    %cst_5 = arith.constant 1.000000e-24 : f32
    %7 = vector.broadcast %cst_5 : f32 to vector<128x1xf32>
    %8 = arith.maximumf %6, %7 : vector<128x1xf32>
    %9 = math.rsqrt %8 : vector<128x1xf32>
    %cst_6 = arith.constant 14.2857141 : f32
    %10 = vector.broadcast %cst_6 : f32 to vector<128x1xf32>
    %11 = arith.mulf %9, %10 : vector<128x1xf32>
    %12 = vector.broadcast %11 : vector<128x1xf32> to vector<128x128xf32>
    %13 = arith.mulf %3, %12 : vector<128x128xf32>
    %c128_i32 = arith.constant 128 : i32
    %14 = arith.muli %arg0, %c128_i32 : i32
    %15 = tpu.assume_multiple %14, 128 : i32
    %16 = arith.index_cast %15 : i32 to index
    %c0_7 = arith.constant 0 : index
    %17 = vector.load %arg4[%16, %c0_7] : memref<128x128xf32, #tpu.memory_space<vmem>>, vector<128x128xf32>
    %18 = arith.mulf %13, %17 : vector<128x128xf32>
    %cst_8 = arith.constant dense<0.000000e+00> : vector<128xf32>
    %19 = vector.multi_reduction <add>, %18, %cst_8 [1] : vector<128x128xf32> to vector<128xf32>
    %20 = vector.shape_cast %19 : vector<128xf32> to vector<128x1xf32>
    %c0_9 = arith.constant 0 : index
    %c0_10 = arith.constant 0 : index
    %21 = vector.load %arg4[%c0_9, %c0_10] : memref<128x128xf32, #tpu.memory_space<vmem>>, vector<128x128xf32>
    %cst_11 = arith.constant dense<0.000000e+00> : vector<128x128xf32>
    %22 = tpu.matmul %13, %21, %cst_11 {dimension_numbers = #tpu.dot_dimension_numbers<[1], [1], [0], [0], [0, 0, 1, 0], [], []>} : vector<128x128xf32>, vector<128x128xf32>, vector<128x128xf32> -> vector<128x128xf32>
    %c0_12 = arith.constant 0 : index
    %c0_13 = arith.constant 0 : index
    %23 = vector.load %arg6[%c0_12, %c0_13] : memref<1x128xf32, #tpu.memory_space<vmem>>, vector<1x128xf32>
    %24 = vector.broadcast %23 : vector<1x128xf32> to vector<128x128xf32>
    %25 = arith.addf %22, %24 : vector<128x128xf32>
    %26 = math.exp %25 : vector<128x128xf32>
    %cst_14 = arith.constant dense<0.000000e+00> : vector<128xf32>
    %27 = vector.multi_reduction <add>, %26, %cst_14 [1] : vector<128x128xf32> to vector<128xf32>
    %28 = vector.shape_cast %27 : vector<128xf32> to vector<128x1xf32>
    %29 = math.log %28 : vector<128x1xf32>
    %cst_15 = arith.constant 14.2857141 : f32
    %30 = vector.broadcast %cst_15 : f32 to vector<128x1xf32>
    %31 = arith.addf %30, %29 : vector<128x1xf32>
    %cst_16 = arith.constant 2.000000e+00 : f32
    %32 = vector.broadcast %cst_16 : f32 to vector<128x1xf32>
    %33 = arith.mulf %32, %20 : vector<128x1xf32>
    %34 = arith.subf %31, %33 : vector<128x1xf32>
    %c0_i32_17 = arith.constant 0 : i32
    %35 = arith.cmpi slt, %arg0, %c0_i32_17 : i32
    %36 = arith.extui %35 : i1 to i32
    %c0_i32_18 = arith.constant 0 : i32
    %37 = arith.cmpi ne, %36, %c0_i32_18 : i32
    scf.if %37 {
      %c0_22 = arith.constant 0 : index
      %c0_23 = arith.constant 0 : index
      %41 = vector.load %arg8[%c0_22, %c0_23] : memref<1x1xf32, #tpu.memory_space<vmem>>, vector<1x1xf32>
      %cst_24 = arith.constant dense<0.000000e+00> : vector<1xf32>
      %42 = vector.multi_reduction <add>, %34, %cst_24 [0] : vector<128x1xf32> to vector<1xf32>
      %43 = vector.shape_cast %42 : vector<1xf32> to vector<1x1xf32>
      %44 = arith.addf %41, %43 : vector<1x1xf32>
      %c0_25 = arith.constant 0 : index
      %c0_26 = arith.constant 0 : index
      %45 = vector.load %arg8[%c0_25, %c0_26] : memref<1x1xf32, #tpu.memory_space<vmem>>, vector<1x1xf32>
      tpu.vector_store %arg8[%c0_25, %c0_26], %44 {strides = array<i32>} : memref<1x1xf32, #tpu.memory_space<vmem>>, vector<1x1xf32>,
      %c0_27 = arith.constant 0 : index
      %c0_28 = arith.constant 0 : index
      %46 = vector.load %arg7[%c0_27, %c0_28] : memref<1x128xf32, #tpu.memory_space<vmem>>, vector<1x128xf32>
      %cst_29 = arith.constant dense<0.000000e+00> : vector<128xf32>
      %47 = vector.multi_reduction <add>, %26, %cst_29 [0] : vector<128x128xf32> to vector<128xf32>
      %48 = vector.shape_cast %47 : vector<128xf32> to vector<1x128xf32>
      %49 = arith.addf %46, %48 : vector<1x128xf32>
      %c0_30 = arith.constant 0 : index
      %c0_31 = arith.constant 0 : index
      %50 = vector.load %arg7[%c0_30, %c0_31] : memref<1x128xf32, #tpu.memory_space<vmem>>, vector<1x128xf32>
      tpu.vector_store %arg7[%c0_30, %c0_31], %49 {strides = array<i32>} : memref<1x128xf32, #tpu.memory_space<vmem>>, vector<1x128xf32>,
    } else {
    }
    %c0_i32_19 = arith.constant 0 : i32
    %38 = arith.cmpi eq, %arg0, %c0_i32_19 : i32
    %39 = arith.extui %38 : i1 to i32
    %cst_20 = arith.constant 14.2857141 : f32
    %c0_i32_21 = arith.constant 0 : i32
    %40 = arith.cmpi ne, %39, %c0_i32_21 : i32
    scf.if %40 {
      %41 = tpu.iota {dimensions = array<i32: 0>} : vector<128x1xi32>
      %42 = vector.broadcast %15 : i32 to vector<128x1xi32>
      %43 = arith.addi %42, %41 : vector<128x1xi32>
      %c8_i32 = arith.constant 8 : i32
      %44 = vector.broadcast %c8_i32 : i32 to vector<128x1xi32>
      %45 = arith.cmpi slt, %43, %44 : vector<128x1xi32>
      %c0_22 = arith.constant 0 : index
      %c0_23 = arith.constant 0 : index
      %46 = vector.load %arg8[%c0_22, %c0_23] : memref<1x1xf32, #tpu.memory_space<vmem>>, vector<1x1xf32>
      %cst_24 = arith.constant 0.000000e+00 : f32
      %47 = vector.broadcast %cst_24 : f32 to vector<128x1xf32>
      %48 = arith.select %45, %34, %47 : vector<128x1xi1>, vector<128x1xf32>
      %cst_25 = arith.constant dense<0.000000e+00> : vector<1xf32>
      %49 = vector.multi_reduction <add>, %48, %cst_25 [0] : vector<128x1xf32> to vector<1xf32>
      %50 = vector.shape_cast %49 : vector<1xf32> to vector<1x1xf32>
      %51 = arith.addf %46, %50 : vector<1x1xf32>
      %c0_26 = arith.constant 0 : index
      %c0_27 = arith.constant 0 : index
      %52 = vector.load %arg8[%c0_26, %c0_27] : memref<1x1xf32, #tpu.memory_space<vmem>>, vector<1x1xf32>
      tpu.vector_store %arg8[%c0_26, %c0_27], %51 {strides = array<i32>} : memref<1x1xf32, #tpu.memory_space<vmem>>, vector<1x1xf32>,
      %c0_28 = arith.constant 0 : index
      %c0_29 = arith.constant 0 : index
      %53 = vector.load %arg7[%c0_28, %c0_29] : memref<1x128xf32, #tpu.memory_space<vmem>>, vector<1x128xf32>
      %cst_30 = arith.constant 0.000000e+00 : f32
      %54 = vector.shape_cast %45 : vector<128x1xi1> to vector<128x1xi1>
      %55 = vector.broadcast %54 : vector<128x1xi1> to vector<128x128xi1>
      %56 = vector.broadcast %cst_30 : f32 to vector<128x128xf32>
      %57 = arith.select %55, %26, %56 : vector<128x128xi1>, vector<128x128xf32>
      %cst_31 = arith.constant dense<0.000000e+00> : vector<128xf32>
      %58 = vector.multi_reduction <add>, %57, %cst_31 [0] : vector<128x128xf32> to vector<128xf32>
      %59 = vector.shape_cast %58 : vector<128xf32> to vector<1x128xf32>
      %60 = arith.addf %53, %59 : vector<1x128xf32>
      %c0_32 = arith.constant 0 : index
      %c0_33 = arith.constant 0 : index
      %61 = vector.load %arg7[%c0_32, %c0_33] : memref<1x128xf32, #tpu.memory_space<vmem>>, vector<1x128xf32>
      tpu.vector_store %arg7[%c0_32, %c0_33], %60 {strides = array<i32>} : memref<1x128xf32, #tpu.memory_space<vmem>>, vector<1x128xf32>,
      %c0_34 = arith.constant 0 : index
      %c0_35 = arith.constant 0 : index
      %62 = vector.load %arg7[%c0_34, %c0_35] : memref<1x128xf32, #tpu.memory_space<vmem>>, vector<1x128xf32>
      %63 = math.log %62 : vector<1x128xf32>
      %64 = vector.broadcast %cst_20 : f32 to vector<1x128xf32>
      %65 = arith.addf %64, %63 : vector<1x128xf32>
      %66 = tpu.iota {dimensions = array<i32: 1>} : vector<1x128xi32>
      %c8_i32_36 = arith.constant 8 : i32
      %67 = vector.broadcast %c8_i32_36 : i32 to vector<1x128xi32>
      %68 = arith.cmpi slt, %66, %67 : vector<1x128xi32>
      %cst_37 = arith.constant 0.000000e+00 : f32
      %69 = vector.broadcast %cst_37 : f32 to vector<1x128xf32>
      %70 = arith.select %68, %65, %69 : vector<1x128xi1>, vector<1x128xf32>
      %cst_38 = arith.constant dense<0.000000e+00> : vector<1xf32>
      %71 = vector.multi_reduction <add>, %70, %cst_38 [1] : vector<1x128xf32> to vector<1xf32>
      %72 = vector.shape_cast %71 : vector<1xf32> to vector<1x1xf32>
      %c0_39 = arith.constant 0 : index
      %c0_40 = arith.constant 0 : index
      %73 = vector.load %arg8[%c0_39, %c0_40] : memref<1x1xf32, #tpu.memory_space<vmem>>, vector<1x1xf32>
      %74 = arith.addf %73, %72 : vector<1x1xf32>
      %cst_41 = arith.constant 6.250000e-02 : f32
      %75 = vector.broadcast %cst_41 : f32 to vector<1x1xf32>
      %76 = arith.mulf %75, %74 : vector<1x1xf32>
      %c0_42 = arith.constant 0 : index
      %c0_43 = arith.constant 0 : index
      %77 = vector.load %arg3[%c0_42, %c0_43] : memref<1x1xf32, #tpu.memory_space<vmem>>, vector<1x1xf32>
      tpu.vector_store %arg3[%c0_42, %c0_43], %76 {strides = array<i32>} : memref<1x1xf32, #tpu.memory_space<vmem>>, vector<1x1xf32>,
    } else {
    }
    return
  }
  func.func @transform_0(%arg0: i32) -> (i32, i32) {
    %c0_i32 = arith.constant 0 : i32
    %c0_i32_0 = arith.constant 0 : i32
    return %arg0, %c0_i32 : i32, i32
  }
  func.func @transform_2(%arg0: i32) -> (i32, i32) {
    %c0_i32 = arith.constant 0 : i32
    %c0_i32_0 = arith.constant 0 : i32
    %c0_i32_1 = arith.constant 0 : i32
    return %c0_i32, %c0_i32_0 : i32, i32
  }
}

</mosaic_0001>

<llo_original>
// kernel: tpu_custom_call.1
$region0: #{tpu_custom_call.1}
  #allocation0 [shape = 'u32[]', space=smem, size = 0x4, offset = 0x4, fixed_abs, tag = 'smem constant byte address 0x4 - core index']
  #allocation1 [shape = 'u32[144,128]{1,0:T(1,128)}', space=vmem, size = 0x12000, scoped, tag = 'internal scratch']
  #allocation2 [shape = 'f32[128,128]{1,0:T(8,128)}', space=vmem, size = 0x10000, scoped, tag = 'scratch operand']
  #allocation3 [shape = 'f32[128,128]{1,0:T(8,128)}', space=vmem, size = 0x10000, scoped, tag = 'scratch operand']
  #allocation4 [shape = 'f32[1,128]{1,0:T(1,128)}', space=vmem, size = 0x200, scoped, tag = 'scratch operand']
  #allocation5 [shape = 'f32[1,128]{1,0:T(1,128)}', space=vmem, size = 0x200, scoped, tag = 'scratch operand']
  #allocation6 [shape = 'f32[1,1]{1,0:T(1,128)}', space=vmem, size = 0x200, scoped, tag = 'scratch operand']
  #allocation7 [shape = 's32[1]{0}', space=sflag, size = 0x4, scoped, tag = 'scratch operand']
  #allocation12 [shape = 's32[]', space=sflag, size = 0x4, offset = 0, fixed_abs, tag = 'sflag constant byte address 0x0 - dummy sync flag']
  #allocation13 [shape = 's32[]', space=sflag, size = 0x4, offset = 0, fixed_abs, tag = 'sflag constant byte address 0x0 - dummy sync flag']
  #allocation14 [shape = 'u32[]', space=smem, size = 0x4, offset = 0x44, fixed_abs, tag = 'smem constant byte address 0x44 - assertion arg 0']
  #allocation15 [shape = 'u32[]', space=smem, size = 0x4, offset = 0x48, fixed_abs, tag = 'smem constant byte address 0x48 - assertion arg 1']
  %s0 = inlined_call_operand.hbm [shape: f32[128,128], index: 0, kind: input, shape index: {}]
  %s1 = inlined_call_operand.hbm [shape: f32[128,128], index: 1, kind: input, shape index: {}]
  %s2 = inlined_call_operand.hbm [shape: f32[1,1], index: 2, kind: output, shape index: {}]
  %s3 = sld [smem:[#allocation0]]
  $region34: #{tpu_custom_call.1} parent=0
    _
  %s5 = ssub.s32 1, %s3
  %s6 = scalar_select 0, %s5, %s3
  $region1: #{tpu_custom_call.1} parent=0
    #allocation8 [shape = 'u8[65536]{0}', space=vmem, size = 0x10000, scoped, tag = 'input window, operand 0, single buffered']
    #allocation9 [shape = 's32[1]{0}', space=sflag, size = 0x4, scoped, tag = 'scoped memory for tpu_custom_call.1']
    #allocation10 [shape = 's32[1]{0}', space=sflag, size = 0x4, scoped, tag = 'scoped memory for tpu_custom_call.1']
    #allocation11 [shape = 'u8[512]{0}', space=vmem, size = 0x400, scoped, tag = 'output window, operand 0, single buffered']
    %7 = vsyncpa [#allocation9], 0
    %8 = vsyncpa [#allocation10], 0
    // Predicated region
    $region2: #{tpu_custom_call.1} parent=1 // pred_check
      _
    $region3: #{tpu_custom_call.1} parent=1 // pred_check_branch
      %10 = sbr.rel (0) target = $region5
    $region4: #{tpu_custom_call.1} parent=1 // pred_region
      %s12 = ssub.s32 2048, 2048
      %13 = vsyncadd [#allocation9], %s12
      %s14 = sshll.u32 [#allocation8], 4
      %s15 = int_to_ptr.vmem [resolvable:$true] %s14
      %20 = dma.hbm_to_vmem [thread:$0]  %s0, 2048, %s15, [#allocation9], 128, 128, 8
    $region5: #{tpu_custom_call.1} parent=1 // pred_fallthru
      _
    // Predicated region
    $region6: #{tpu_custom_call.1} parent=1 // pred_check
      _
    $region7: #{tpu_custom_call.1} parent=1 // pred_check_branch
      %22 = sbr.rel (0) target = $region9
    $region8: #{tpu_custom_call.1} parent=1 // pred_region
      %23 = dma.done [#allocation9], 2048
    $region9: #{tpu_custom_call.1} parent=1 // pred_fallthru
      _
    %p24 = scmp.eq.s32.totalorder 0, 0
    // Predicated region
    $region10: #{tpu_custom_call.1} parent=1 // pred_check
      %p25 = pneg %p24
    $region11: #{tpu_custom_call.1} parent=1 // pred_check_branch
      %27 = sbr.rel (%p25) target = $region13
    $region12: #{tpu_custom_call.1} parent=1 // pred_region
      %v28 = vlaneseq
      %v29 = vand.u32 %v28, 127
      %vm30 = vcmp.lt.s32.totalorder %v29, 8
      %v31 = vsel %vm30, -14.285714, -1e+30
      %32 = vst [vmem:[#allocation4] sm:$0x1] %v31
      %33 = vst [vmem:[#allocation5] sm:$0x1] 0.0
      %vm34 = vcmask 0
      %35 = vst.msk [vmem:[#allocation6] sm:$0x1] %vm34, 0.0
      // Predicated region
      $region14: #{tpu_custom_call.1} parent=12 // pred_check
        _
      $region15: #{tpu_custom_call.1} parent=12 // pred_check_branch
        %37 = sbr.rel target = $region17
      $region16: #{tpu_custom_call.1} parent=12 // pred_region
        %38 = sst [smem:[#allocation14]] [#allocation13]
        %39 = sst [smem:[#allocation15]] [#allocation12]
      $region17: #{tpu_custom_call.1} parent=12 // pred_fallthru
        _
      %41 = shalt.err (0)
      %s43 = sshll.u32 [#allocation3], 4
      %s44 = int_to_ptr.vmem [resolvable:$true] %s43
      %46 = dma.hbm_to_vmem [thread:$0]  %s1, 2048, %s44, [#allocation7]
      %s47 = smul.u32 128, 1
      %s48 = sshll.u32 %s47, 4
      %49 = dma.done [#allocation7], %s48
      %v50 = vld [vmem:[#allocation3] sm:$0xff]
      %v51 = vld [vmem:[#allocation3 + $0x8] sm:$0xff]
      %v52 = vld [vmem:[#allocation3 + $0x10] sm:$0xff]
      %v53 = vld [vmem:[#allocation3 + $0x18] sm:$0xff]
      %v54 = vld [vmem:[#allocation3 + $0x20] sm:$0xff]
      %v55 = vld [vmem:[#allocation3 + $0x28] sm:$0xff]
      %v56 = vld [vmem:[#allocation3 + $0x30] sm:$0xff]
      %v57 = vld [vmem:[#allocation3 + $0x38] sm:$0xff]
      %v58 = vld [vmem:[#allocation3 + $0x40] sm:$0xff]
      %v59 = vld [vmem:[#allocation3 + $0x48] sm:$0xff]
      %v60 = vld [vmem:[#allocation3 + $0x50] sm:$0xff]
      %v61 = vld [vmem:[#allocation3 + $0x58] sm:$0xff]
      %v62 = vld [vmem:[#allocation3 + $0x60] sm:$0xff]
      %v63 = vld [vmem:[#allocation3 + $0x68] sm:$0xff]
      %v64 = vld [vmem:[#allocation3 + $0x70] sm:$0xff]
      %v65 = vld [vmem:[#allocation3 + $0x78] sm:$0xff]
      %v66 = vmul.f32 %v50, %v50
      %v67 = vmul.f32 %v51, %v51
      %v68 = vmul.f32 %v52, %v52
      %v69 = vmul.f32 %v53, %v53
      %v70 = vmul.f32 %v54, %v54
      %v71 = vmul.f32 %v55, %v55
      %v72 = vmul.f32 %v56, %v56
      %v73 = vmul.f32 %v57, %v57
      %v74 = vmul.f32 %v58, %v58
      %v75 = vmul.f32 %v59, %v59
      %v76 = vmul.f32 %v60, %v60
      %v77 = vmul.f32 %v61, %v61
      %v78 = vmul.f32 %v62, %v62
      %v79 = vmul.f32 %v63, %v63
      %v80 = vmul.f32 %v64, %v64
      %v81 = vmul.f32 %v65, %v65
      %82 = vadd.xlane.f32.xlu0 %v66
      %v83 = vpop.xlane.xlu0 %82
      %84 = vadd.xlane.f32.xlu0 %v67
      %v85 = vpop.xlane.xlu0 %84
      %86 = vadd.xlane.f32.xlu0 %v68
      %v87 = vpop.xlane.xlu0 %86
      %88 = vadd.xlane.f32.xlu0 %v69
      %v89 = vpop.xlane.xlu0 %88
      %90 = vadd.xlane.f32.xlu0 %v70
      %v91 = vpop.xlane.xlu0 %90
      %92 = vadd.xlane.f32.xlu0 %v71
      %v93 = vpop.xlane.xlu0 %92
      %94 = vadd.xlane.f32.xlu0 %v72
      %v95 = vpop.xlane.xlu0 %94
      %96 = vadd.xlane.f32.xlu0 %v73
      %v97 = vpop.xlane.xlu0 %96
      %98 = vadd.xlane.f32.xlu0 %v74
      %v99 = vpop.xlane.xlu0 %98
      %100 = vadd.xlane.f32.xlu0 %v75
      %v101 = vpop.xlane.xlu0 %100
      %102 = vadd.xlane.f32.xlu0 %v76
      %v103 = vpop.xlane.xlu0 %102
      %104 = vadd.xlane.f32.xlu0 %v77
      %v105 = vpop.xlane.xlu0 %104
      %106 = vadd.xlane.f32.xlu0 %v78
      %v107 = vpop.xlane.xlu0 %106
      %108 = vadd.xlane.f32.xlu0 %v79
      %v109 = vpop.xlane.xlu0 %108
      %110 = vadd.xlane.f32.xlu0 %v80
      %v111 = vpop.xlane.xlu0 %110
      %112 = vadd.xlane.f32.xlu0 %v81
      %v113 = vpop.xlane.xlu0 %112
      %v114 = vmax.f32 %v83, 1e-24
      %v115 = vmax.f32 %v85, 1e-24
      %v116 = vmax.f32 %v87, 1e-24
      %v117 = vmax.f32 %v89, 1e-24
      %v118 = vmax.f32 %v91, 1e-24
      %v119 = vmax.f32 %v93, 1e-24
      %v120 = vmax.f32 %v95, 1e-24
      %v121 = vmax.f32 %v97, 1e-24
      %v122 = vmax.f32 %v99, 1e-24
      %v123 = vmax.f32 %v101, 1e-24
      %v124 = vmax.f32 %v103, 1e-24
      %v125 = vmax.f32 %v105, 1e-24
      %v126 = vmax.f32 %v107, 1e-24
      %v127 = vmax.f32 %v109, 1e-24
      %v128 = vmax.f32 %v111, 1e-24
      %v129 = vmax.f32 %v113, 1e-24
      %v130 = vrsqrt.pop %v114
      %v131 = vrsqrt.pop %v115
      %v132 = vrsqrt.pop %v116
      %v133 = vrsqrt.pop %v117
      %v134 = vrsqrt.pop %v118
      %v135 = vrsqrt.pop %v119
      %v136 = vrsqrt.pop %v120
      %v137 = vrsqrt.pop %v121
      %v138 = vrsqrt.pop %v122
      %v139 = vrsqrt.pop %v123
      %v140 = vrsqrt.pop %v124
      %v141 = vrsqrt.pop %v125
      %v142 = vrsqrt.pop %v126
      %v143 = vrsqrt.pop %v127
      %v144 = vrsqrt.pop %v128
      %v145 = vrsqrt.pop %v129
      %v146 = vmul.f32 %v50, %v130
      %v147 = vmul.f32 %v51, %v131
      %v148 = vmul.f32 %v52, %v132
      %v149 = vmul.f32 %v53, %v133
      %v150 = vmul.f32 %v54, %v134
      %v151 = vmul.f32 %v55, %v135
      %v152 = vmul.f32 %v56, %v136
      %v153 = vmul.f32 %v57, %v137
      %v154 = vmul.f32 %v58, %v138
      %v155 = vmul.f32 %v59, %v139
      %v156 = vmul.f32 %v60, %v140
      %v157 = vmul.f32 %v61, %v141
      %v158 = vmul.f32 %v62, %v142
      %v159 = vmul.f32 %v63, %v143
      %v160 = vmul.f32 %v64, %v144
      %v161 = vmul.f32 %v65, %v145
      %162 = vst [vmem:[#allocation2] sm:$0xff] %v146
      %163 = vst [vmem:[#allocation2 + $0x8] sm:$0xff] %v147
      %164 = vst [vmem:[#allocation2 + $0x10] sm:$0xff] %v148
      %165 = vst [vmem:[#allocation2 + $0x18] sm:$0xff] %v149
      %166 = vst [vmem:[#allocation2 + $0x20] sm:$0xff] %v150
      %167 = vst [vmem:[#allocation2 + $0x28] sm:$0xff] %v151
      %168 = vst [vmem:[#allocation2 + $0x30] sm:$0xff] %v152
      %169 = vst [vmem:[#allocation2 + $0x38] sm:$0xff] %v153
      %170 = vst [vmem:[#allocation2 + $0x40] sm:$0xff] %v154
      %171 = vst [vmem:[#allocation2 + $0x48] sm:$0xff] %v155
      %172 = vst [vmem:[#allocation2 + $0x50] sm:$0xff] %v156
      %173 = vst [vmem:[#allocation2 + $0x58] sm:$0xff] %v157
      %174 = vst [vmem:[#allocation2 + $0x60] sm:$0xff] %v158
      %175 = vst [vmem:[#allocation2 + $0x68] sm:$0xff] %v159
      %176 = vst [vmem:[#allocation2 + $0x70] sm:$0xff] %v160
      %177 = vst [vmem:[#allocation2 + $0x78] sm:$0xff] %v161
    $region13: #{tpu_custom_call.1} parent=1 // pred_fallthru
      _
    %v178 = vld [vmem:[#allocation8] sm:$0xff]
    %v179 = vld [vmem:[#allocation8 + $0x8] sm:$0xff]
    %v180 = vld [vmem:[#allocation8 + $0x10] sm:$0xff]
    %v181 = vld [vmem:[#allocation8 + $0x18] sm:$0xff]
    %v182 = vld [vmem:[#allocation8 + $0x20] sm:$0xff]
    %v183 = vld [vmem:[#allocation8 + $0x28] sm:$0xff]
    %v184 = vld [vmem:[#allocation8 + $0x30] sm:$0xff]
    %v185 = vld [vmem:[#allocation8 + $0x38] sm:$0xff]
    %v186 = vld [vmem:[#allocation8 + $0x40] sm:$0xff]
    %v187 = vld [vmem:[#allocation8 + $0x48] sm:$0xff]
    %v188 = vld [vmem:[#allocation8 + $0x50] sm:$0xff]
    %v189 = vld [vmem:[#allocation8 + $0x58] sm:$0xff]
    %v190 = vld [vmem:[#allocation8 + $0x60] sm:$0xff]
    %v191 = vld [vmem:[#allocation8 + $0x68] sm:$0xff]
    %v192 = vld [vmem:[#allocation8 + $0x70] sm:$0xff]
    %v193 = vld [vmem:[#allocation8 + $0x78] sm:$0xff]
    %v194 = vmul.f32 %v178, %v178
    %v195 = vmul.f32 %v179, %v179
    %v196 = vmul.f32 %v180, %v180
    %v197 = vmul.f32 %v181, %v181
    %v198 = vmul.f32 %v182, %v182
    %v199 = vmul.f32 %v183, %v183
    %v200 = vmul.f32 %v184, %v184
    %v201 = vmul.f32 %v185, %v185
    %v202 = vmul.f32 %v186, %v186
    %v203 = vmul.f32 %v187, %v187
    %v204 = vmul.f32 %v188, %v188
    %v205 = vmul.f32 %v189, %v189
    %v206 = vmul.f32 %v190, %v190
    %v207 = vmul.f32 %v191, %v191
    %v208 = vmul.f32 %v192, %v192
    %v209 = vmul.f32 %v193, %v193
    %210 = vadd.xlane.f32.xlu0 %v194
    %v211 = vpop.xlane.xlu0 %210
    %212 = vadd.xlane.f32.xlu0 %v195
    %v213 = vpop.xlane.xlu0 %212
    %214 = vadd.xlane.f32.xlu0 %v196
    %v215 = vpop.xlane.xlu0 %214
    %216 = vadd.xlane.f32.xlu0 %v197
    %v217 = vpop.xlane.xlu0 %216
    %218 = vadd.xlane.f32.xlu0 %v198
    %v219 = vpop.xlane.xlu0 %218
    %220 = vadd.xlane.f32.xlu0 %v199
    %v221 = vpop.xlane.xlu0 %220
    %222 = vadd.xlane.f32.xlu0 %v200
    %v223 = vpop.xlane.xlu0 %222
    %224 = vadd.xlane.f32.xlu0 %v201
    %v225 = vpop.xlane.xlu0 %224
    %226 = vadd.xlane.f32.xlu0 %v202
    %v227 = vpop.xlane.xlu0 %226
    %228 = vadd.xlane.f32.xlu0 %v203
    %v229 = vpop.xlane.xlu0 %228
    %230 = vadd.xlane.f32.xlu0 %v204
    %v231 = vpop.xlane.xlu0 %230
    %232 = vadd.xlane.f32.xlu0 %v205
    %v233 = vpop.xlane.xlu0 %232
    %234 = vadd.xlane.f32.xlu0 %v206
    %v235 = vpop.xlane.xlu0 %234
    %236 = vadd.xlane.f32.xlu0 %v207
    %v237 = vpop.xlane.xlu0 %236
    %238 = vadd.xlane.f32.xlu0 %v208
    %v239 = vpop.xlane.xlu0 %238
    %240 = vadd.xlane.f32.xlu0 %v209
    %v241 = vpop.xlane.xlu0 %240
    %v242 = vmax.f32 %v211, 1e-24
    %v243 = vmax.f32 %v213, 1e-24
    %v244 = vmax.f32 %v215, 1e-24
    %v245 = vmax.f32 %v217, 1e-24
    %v246 = vmax.f32 %v219, 1e-24
    %v247 = vmax.f32 %v221, 1e-24
    %v248 = vmax.f32 %v223, 1e-24
    %v249 = vmax.f32 %v225, 1e-24
    %v250 = vmax.f32 %v227, 1e-24
    %v251 = vmax.f32 %v229, 1e-24
    %v252 = vmax.f32 %v231, 1e-24
    %v253 = vmax.f32 %v233, 1e-24
    %v254 = vmax.f32 %v235, 1e-24
    %v255 = vmax.f32 %v237, 1e-24
    %v256 = vmax.f32 %v239, 1e-24
    %v257 = vmax.f32 %v241, 1e-24
    %v258 = vrsqrt.pop %v242
    %v259 = vrsqrt.pop %v243
    %v260 = vrsqrt.pop %v244
    %v261 = vrsqrt.pop %v245
    %v262 = vrsqrt.pop %v246
    %v263 = vrsqrt.pop %v247
    %v264 = vrsqrt.pop %v248
    %v265 = vrsqrt.pop %v249
    %v266 = vrsqrt.pop %v250
    %v267 = vrsqrt.pop %v251
    %v268 = vrsqrt.pop %v252
    %v269 = vrsqrt.pop %v253
    %v270 = vrsqrt.pop %v254
    %v271 = vrsqrt.pop %v255
    %v272 = vrsqrt.pop %v256
    %v273 = vrsqrt.pop %v257
    %v274 = vmul.f32 %v258, 14.285714
    %v275 = vmul.f32 %v259, 14.285714
    %v276 = vmul.f32 %v260, 14.285714
    %v277 = vmul.f32 %v261, 14.285714
    %v278 = vmul.f32 %v262, 14.285714
    %v279 = vmul.f32 %v263, 14.285714
    %v280 = vmul.f32 %v264, 14.285714
    %v281 = vmul.f32 %v265, 14.285714
    %v282 = vmul.f32 %v266, 14.285714
    %v283 = vmul.f32 %v267, 14.285714
    %v284 = vmul.f32 %v268, 14.285714
    %v285 = vmul.f32 %v269, 14.285714
    %v286 = vmul.f32 %v270, 14.285714
    %v287 = vmul.f32 %v271, 14.285714
    %v288 = vmul.f32 %v272, 14.285714
    %v289 = vmul.f32 %v273, 14.285714
    %v290 = vmul.f32 %v178, %v274
    %v291 = vmul.f32 %v179, %v275
    %v292 = vmul.f32 %v180, %v276
    %v293 = vmul.f32 %v181, %v277
    %v294 = vmul.f32 %v182, %v278
    %v295 = vmul.f32 %v183, %v279
    %v296 = vmul.f32 %v184, %v280
    %v297 = vmul.f32 %v185, %v281
    %v298 = vmul.f32 %v186, %v282
    %v299 = vmul.f32 %v187, %v283
    %v300 = vmul.f32 %v188, %v284
    %v301 = vmul.f32 %v189, %v285
    %v302 = vmul.f32 %v190, %v286
    %v303 = vmul.f32 %v191, %v287
    %v304 = vmul.f32 %v192, %v288
    %v305 = vmul.f32 %v193, %v289
    %s306 = smul.u32 0, 128
    %s307 = scalar_lea.vmem [#allocation2], %s306
    %v308 = vld [vmem:[%s307] sm:$0xff]
    %v309 = vld [vmem:[%s307 + $0x8] sm:$0xff]
    %v310 = vld [vmem:[%s307 + $0x10] sm:$0xff]
    %v311 = vld [vmem:[%s307 + $0x18] sm:$0xff]
    %v312 = vld [vmem:[%s307 + $0x20] sm:$0xff]
    %v313 = vld [vmem:[%s307 + $0x28] sm:$0xff]
    %v314 = vld [vmem:[%s307 + $0x30] sm:$0xff]
    %v315 = vld [vmem:[%s307 + $0x38] sm:$0xff]
    %v316 = vld [vmem:[%s307 + $0x40] sm:$0xff]
    %v317 = vld [vmem:[%s307 + $0x48] sm:$0xff]
    %v318 = vld [vmem:[%s307 + $0x50] sm:$0xff]
    %v319 = vld [vmem:[%s307 + $0x58] sm:$0xff]
    %v320 = vld [vmem:[%s307 + $0x60] sm:$0xff]
    %v321 = vld [vmem:[%s307 + $0x68] sm:$0xff]
    %v322 = vld [vmem:[%s307 + $0x70] sm:$0xff]
    %v323 = vld [vmem:[%s307 + $0x78] sm:$0xff]
    %v324 = vmul.f32 %v290, %v308
    %v325 = vmul.f32 %v291, %v309
    %v326 = vmul.f32 %v292, %v310
    %v327 = vmul.f32 %v293, %v311
    %v328 = vmul.f32 %v294, %v312
    %v329 = vmul.f32 %v295, %v313
    %v330 = vmul.f32 %v296, %v314
    %v331 = vmul.f32 %v297, %v315
    %v332 = vmul.f32 %v298, %v316
    %v333 = vmul.f32 %v299, %v317
    %v334 = vmul.f32 %v300, %v318
    %v335 = vmul.f32 %v301, %v319
    %v336 = vmul.f32 %v302, %v320
    %v337 = vmul.f32 %v303, %v321
    %v338 = vmul.f32 %v304, %v322
    %v339 = vmul.f32 %v305, %v323
    %340 = vadd.xlane.f32.xlu0 %v324
    %v341 = vpop.xlane.xlu0 %340
    %342 = vadd.xlane.f32.xlu0 %v325
    %v343 = vpop.xlane.xlu0 %342
    %344 = vadd.xlane.f32.xlu0 %v326
    %v345 = vpop.xlane.xlu0 %344
    %346 = vadd.xlane.f32.xlu0 %v327
    %v347 = vpop.xlane.xlu0 %346
    %348 = vadd.xlane.f32.xlu0 %v328
    %v349 = vpop.xlane.xlu0 %348
    %350 = vadd.xlane.f32.xlu0 %v329
    %v351 = vpop.xlane.xlu0 %350
    %352 = vadd.xlane.f32.xlu0 %v330
    %v353 = vpop.xlane.xlu0 %352
    %354 = vadd.xlane.f32.xlu0 %v331
    %v355 = vpop.xlane.xlu0 %354
    %356 = vadd.xlane.f32.xlu0 %v332
    %v357 = vpop.xlane.xlu0 %356
    %358 = vadd.xlane.f32.xlu0 %v333
    %v359 = vpop.xlane.xlu0 %358
    %360 = vadd.xlane.f32.xlu0 %v334
    %v361 = vpop.xlane.xlu0 %360
    %362 = vadd.xlane.f32.xlu0 %v335
    %v363 = vpop.xlane.xlu0 %362
    %364 = vadd.xlane.f32.xlu0 %v336
    %v365 = vpop.xlane.xlu0 %364
    %366 = vadd.xlane.f32.xlu0 %v337
    %v367 = vpop.xlane.xlu0 %366
    %368 = vadd.xlane.f32.xlu0 %v338
    %v369 = vpop.xlane.xlu0 %368
    %370 = vadd.xlane.f32.xlu0 %v339
    %v371 = vpop.xlane.xlu0 %370
    %v372 = vld [vmem:[#allocation2] sm:$0xff]
    %v373 = vld [vmem:[#allocation2 + $0x8] sm:$0xff]
    %v374 = vld [vmem:[#allocation2 + $0x10] sm:$0xff]
    %v375 = vld [vmem:[#allocation2 + $0x18] sm:$0xff]
    %v376 = vld [vmem:[#allocation2 + $0x20] sm:$0xff]
    %v377 = vld [vmem:[#allocation2 + $0x28] sm:$0xff]
    %v378 = vld [vmem:[#allocation2 + $0x30] sm:$0xff]
    %v379 = vld [vmem:[#allocation2 + $0x38] sm:$0xff]
    %v380 = vld [vmem:[#allocation2 + $0x40] sm:$0xff]
    %v381 = vld [vmem:[#allocation2 + $0x48] sm:$0xff]
    %v382 = vld [vmem:[#allocation2 + $0x50] sm:$0xff]
    %v383 = vld [vmem:[#allocation2 + $0x58] sm:$0xff]
    %v384 = vld [vmem:[#allocation2 + $0x60] sm:$0xff]
    %v385 = vld [vmem:[#allocation2 + $0x68] sm:$0xff]
    %v386 = vld [vmem:[#allocation2 + $0x70] sm:$0xff]
    %v387 = vld [vmem:[#allocation2 + $0x78] sm:$0xff]
    %v388 = vld [vmem:[#allocation4] sm:$0x1]
    %v390 = vlaneseq
    %v391 = vshrl.u32 %v390, 7
    %v392 = vsub.s32 0, %v391
    %v393 = vrot.slane %v388, %v392
    %395 = vmatprep.subr.mxu0 0.0
    %396 = vmatpush1.xpose.msra.mxu0 %v387
    %397 = vmatprep.subr.mxu0 0.0
    %398 = vmatpush1.xpose.msra.mxu0 %v386
    %399 = vmatprep.subr.mxu0 0.0
    %400 = vmatpush1.xpose.msra.mxu0 %v385
    %401 = vmatprep.subr.mxu0 0.0
    %402 = vmatpush1.xpose.msra.mxu0 %v384
    %403 = vmatprep.subr.mxu0 0.0
    %404 = vmatpush1.xpose.msra.mxu0 %v383
    %405 = vmatprep.subr.mxu0 0.0
    %406 = vmatpush1.xpose.msra.mxu0 %v382
    %407 = vmatprep.subr.mxu0 0.0
    %408 = vmatpush1.xpose.msra.mxu0 %v381
    %409 = vmatprep.subr.mxu0 0.0
    %410 = vmatpush1.xpose.msra.mxu0 %v380
    %411 = vmatprep.subr.mxu0 0.0
    %412 = vmatpush1.xpose.msra.mxu0 %v379
    %413 = vmatprep.subr.mxu0 0.0
    %414 = vmatpush1.xpose.msra.mxu0 %v378
    %415 = vmatprep.subr.mxu0 0.0
    %416 = vmatpush1.xpose.msra.mxu0 %v377
    %417 = vmatprep.subr.mxu0 0.0
    %418 = vmatpush1.xpose.msra.mxu0 %v376
    %419 = vmatprep.subr.mxu0 0.0
    %420 = vmatpush1.xpose.msra.mxu0 %v375
    %421 = vmatprep.subr.mxu0 0.0
    %422 = vmatpush1.xpose.msra.mxu0 %v374
    %423 = vmatprep.subr.mxu0 0.0
    %424 = vmatpush1.xpose.msra.mxu0 %v373
    %425 = vmatprep.subr.mxu0 0.0
    %426 = vmatpush1.xpose.msra.mxu0 %v372
    %427 = vmatprep.subr.mxu0 0.0
    %428 = vmatpush2.xpose.msra.mxu0 0.0
    %429 = vmatprep.subr.mxu0 0.0
    %430 = vmatpush2.xpose.msra.mxu0 0.0
    %431 = vmatprep.subr.mxu0 0.0
    %432 = vmatpush2.xpose.msra.mxu0 0.0
    %433 = vmatprep.subr.mxu0 0.0
    %434 = vmatpush2.xpose.msra.mxu0 0.0
    %435 = vmatprep.subr.mxu0 0.0
    %436 = vmatpush2.xpose.msra.mxu0 0.0
    %437 = vmatprep.subr.mxu0 0.0
    %438 = vmatpush2.xpose.msra.mxu0 0.0
    %439 = vmatprep.subr.mxu0 0.0
    %440 = vmatpush2.xpose.msra.mxu0 0.0
    %441 = vmatprep.subr.mxu0 0.0
    %442 = vmatpush2.xpose.msra.mxu0 0.0
    %443 = vmatprep.subr.mxu0 0.0
    %444 = vmatpush2.xpose.msra.mxu0 0.0
    %445 = vmatprep.subr.mxu0 0.0
    %446 = vmatpush2.xpose.msra.mxu0 0.0
    %447 = vmatprep.subr.mxu0 0.0
    %448 = vmatpush2.xpose.msra.mxu0 0.0
    %449 = vmatprep.subr.mxu0 0.0
    %450 = vmatpush2.xpose.msra.mxu0 0.0
    %451 = vmatprep.subr.mxu0 0.0
    %452 = vmatpush2.xpose.msra.mxu0 0.0
    %453 = vmatprep.subr.mxu0 0.0
    %454 = vmatpush2.xpose.msra.mxu0 0.0
    %455 = vmatprep.subr.mxu0 0.0
    %456 = vmatpush2.xpose.msra.mxu0 0.0
    %457 = vmatprep.subr.mxu0 0.0
    %458 = vmatpush2.xpose.msra.mxu0 0.0
    %459 = vmatprep.mubr.f32.mxu0 0.0
    %460 = vmatmul.mubr.f32.gmra.mxu0 %v290
    %v461 = vpop.f32.mrf.mxu0
    %v462 = vadd.f32 %v393, %v461
    %v463 = vpop.f32.mrf.mxu0
    %464 = vmatprep.mubr.f32.mxu0 0.0
    %465 = vmatmul.mubr.f32.gmra.mxu0 %v291
    %v466 = vpop.f32.mrf.mxu0
    %v467 = vadd.f32 %v393, %v466
    %v468 = vpop.f32.mrf.mxu0
    %469 = vmatprep.mubr.f32.mxu0 0.0
    %470 = vmatmul.mubr.f32.gmra.mxu0 %v292
    %v471 = vpop.f32.mrf.mxu0
    %v472 = vadd.f32 %v393, %v471
    %v473 = vpop.f32.mrf.mxu0
    %474 = vmatprep.mubr.f32.mxu0 0.0
    %475 = vmatmul.mubr.f32.gmra.mxu0 %v293
    %v476 = vpop.f32.mrf.mxu0
    %v477 = vadd.f32 %v393, %v476
    %v478 = vpop.f32.mrf.mxu0
    %479 = vmatprep.mubr.f32.mxu0 0.0
    %480 = vmatmul.mubr.f32.gmra.mxu0 %v294
    %v481 = vpop.f32.mrf.mxu0
    %v482 = vadd.f32 %v393, %v481
    %v483 = vpop.f32.mrf.mxu0
    %484 = vmatprep.mubr.f32.mxu0 0.0
    %485 = vmatmul.mubr.f32.gmra.mxu0 %v295
    %v486 = vpop.f32.mrf.mxu0
    %v487 = vadd.f32 %v393, %v486
    %v488 = vpop.f32.mrf.mxu0
    %489 = vmatprep.mubr.f32.mxu0 0.0
    %490 = vmatmul.mubr.f32.gmra.mxu0 %v296
    %v491 = vpop.f32.mrf.mxu0
    %v492 = vadd.f32 %v393, %v491
    %v493 = vpop.f32.mrf.mxu0
    %494 = vmatprep.mubr.f32.mxu0 0.0
    %495 = vmatmul.mubr.f32.gmra.mxu0 %v297
    %v496 = vpop.f32.mrf.mxu0
    %v497 = vadd.f32 %v393, %v496
    %v498 = vpop.f32.mrf.mxu0
    %499 = vmatprep.mubr.f32.mxu0 0.0
    %500 = vmatmul.mubr.f32.gmra.mxu0 %v298
    %v501 = vpop.f32.mrf.mxu0
    %v502 = vadd.f32 %v393, %v501
    %v503 = vpop.f32.mrf.mxu0
    %504 = vmatprep.mubr.f32.mxu0 0.0
    %505 = vmatmul.mubr.f32.gmra.mxu0 %v299
    %v506 = vpop.f32.mrf.mxu0
    %v507 = vadd.f32 %v393, %v506
    %v508 = vpop.f32.mrf.mxu0
    %509 = vmatprep.mubr.f32.mxu0 0.0
    %510 = vmatmul.mubr.f32.gmra.mxu0 %v300
    %v511 = vpop.f32.mrf.mxu0
    %v512 = vadd.f32 %v393, %v511
    %v513 = vpop.f32.mrf.mxu0
    %514 = vmatprep.mubr.f32.mxu0 0.0
    %515 = vmatmul.mubr.f32.gmra.mxu0 %v301
    %v516 = vpop.f32.mrf.mxu0
    %v517 = vadd.f32 %v393, %v516
    %v518 = vpop.f32.mrf.mxu0
    %519 = vmatprep.mubr.f32.mxu0 0.0
    %520 = vmatmul.mubr.f32.gmra.mxu0 %v302
    %v521 = vpop.f32.mrf.mxu0
    %v522 = vadd.f32 %v393, %v521
    %v523 = vpop.f32.mrf.mxu0
    %524 = vmatprep.mubr.f32.mxu0 0.0
    %525 = vmatmul.mubr.f32.gmra.mxu0 %v303
    %v526 = vpop.f32.mrf.mxu0
    %v527 = vadd.f32 %v393, %v526
    %v528 = vpop.f32.mrf.mxu0
    %529 = vmatprep.mubr.f32.mxu0 0.0
    %530 = vmatmul.mubr.f32.gmra.mxu0 %v304
    %v531 = vpop.f32.mrf.mxu0
    %v532 = vadd.f32 %v393, %v531
    %v533 = vpop.f32.mrf.mxu0
    %534 = vmatprep.mubr.f32.mxu0 0.0
    %535 = vmatmul.mubr.f32.gmra.mxu0 %v305
    %v536 = vpop.f32.mrf.mxu0
    %v537 = vadd.f32 %v393, %v536
    %v538 = vpop.f32.mrf.mxu0
    %539 = vdwg.mxu0
    %v540 = vmul.f32 %v462, 1.442695
    %v541 = vpow.pop %v540
    %v542 = vmul.f32 %v467, 1.442695
    %v543 = vpow.pop %v542
    %v544 = vmul.f32 %v472, 1.442695
    %v545 = vpow.pop %v544
    %v546 = vmul.f32 %v477, 1.442695
    %v547 = vpow.pop %v546
    %v548 = vmul.f32 %v482, 1.442695
    %v549 = vpow.pop %v548
    %v550 = vmul.f32 %v487, 1.442695
    %v551 = vpow.pop %v550
    %v552 = vmul.f32 %v492, 1.442695
    %v553 = vpow.pop %v552
    %v554 = vmul.f32 %v497, 1.442695
    %v555 = vpow.pop %v554
    %v556 = vmul.f32 %v502, 1.442695
    %v557 = vpow.pop %v556
    %v558 = vmul.f32 %v507, 1.442695
    %v559 = vpow.pop %v558
    %v560 = vmul.f32 %v512, 1.442695
    %v561 = vpow.pop %v560
    %v562 = vmul.f32 %v517, 1.442695
    %v563 = vpow.pop %v562
    %v564 = vmul.f32 %v522, 1.442695
    %v565 = vpow.pop %v564
    %v566 = vmul.f32 %v527, 1.442695
    %v567 = vpow.pop %v566
    %v568 = vmul.f32 %v532, 1.442695
    %v569 = vpow.pop %v568
    %v570 = vmul.f32 %v537, 1.442695
    %v571 = vpow.pop %v570
    %572 = vadd.xlane.f32.xlu0 %v541
    %v573 = vpop.xlane.xlu0 %572
    %574 = vadd.xlane.f32.xlu0 %v543
    %v575 = vpop.xlane.xlu0 %574
    %576 = vadd.xlane.f32.xlu0 %v545
    %v577 = vpop.xlane.xlu0 %576
    %578 = vadd.xlane.f32.xlu0 %v547
    %v579 = vpop.xlane.xlu0 %578
    %580 = vadd.xlane.f32.xlu0 %v549
    %v581 = vpop.xlane.xlu0 %580
    %582 = vadd.xlane.f32.xlu0 %v551
    %v583 = vpop.xlane.xlu0 %582
    %584 = vadd.xlane.f32.xlu0 %v553
    %v585 = vpop.xlane.xlu0 %584
    %586 = vadd.xlane.f32.xlu0 %v555
    %v587 = vpop.xlane.xlu0 %586
    %588 = vadd.xlane.f32.xlu0 %v557
    %v589 = vpop.xlane.xlu0 %588
    %590 = vadd.xlane.f32.xlu0 %v559
    %v591 = vpop.xlane.xlu0 %590
    %592 = vadd.xlane.f32.xlu0 %v561
    %v593 = vpop.xlane.xlu0 %592
    %594 = vadd.xlane.f32.xlu0 %v563
    %v595 = vpop.xlane.xlu0 %594
    %596 = vadd.xlane.f32.xlu0 %v565
    %v597 = vpop.xlane.xlu0 %596
    %598 = vadd.xlane.f32.xlu0 %v567
    %v599 = vpop.xlane.xlu0 %598
    %600 = vadd.xlane.f32.xlu0 %v569
    %v601 = vpop.xlane.xlu0 %600
    %602 = vadd.xlane.f32.xlu0 %v571
    %v603 = vpop.xlane.xlu0 %602
    %v604 = vlog2.pop %v573
    %v605 = vmul.f32 %v604, 0.6931472
    %v606 = vlog2.pop %v575
    %v607 = vmul.f32 %v606, 0.6931472
    %v608 = vlog2.pop %v577
    %v609 = vmul.f32 %v608, 0.6931472
    %v610 = vlog2.pop %v579
    %v611 = vmul.f32 %v610, 0.6931472
    %v612 = vlog2.pop %v581
    %v613 = vmul.f32 %v612, 0.6931472
    %v614 = vlog2.pop %v583
    %v615 = vmul.f32 %v614, 0.6931472
    %v616 = vlog2.pop %v585
    %v617 = vmul.f32 %v616, 0.6931472
    %v618 = vlog2.pop %v587
    %v619 = vmul.f32 %v618, 0.6931472
    %v620 = vlog2.pop %v589
    %v621 = vmul.f32 %v620, 0.6931472
    %v622 = vlog2.pop %v591
    %v623 = vmul.f32 %v622, 0.6931472
    %v624 = vlog2.pop %v593
    %v625 = vmul.f32 %v624, 0.6931472
    %v626 = vlog2.pop %v595
    %v627 = vmul.f32 %v626, 0.6931472
    %v628 = vlog2.pop %v597
    %v629 = vmul.f32 %v628, 0.6931472
    %v630 = vlog2.pop %v599
    %v631 = vmul.f32 %v630, 0.6931472
    %v632 = vlog2.pop %v601
    %v633 = vmul.f32 %v632, 0.6931472
    %v634 = vlog2.pop %v603
    %v635 = vmul.f32 %v634, 0.6931472
    %v636 = vadd.f32 %v605, 14.285714
    %v637 = vadd.f32 %v607, 14.285714
    %v638 = vadd.f32 %v609, 14.285714
    %v639 = vadd.f32 %v611, 14.285714
    %v640 = vadd.f32 %v613, 14.285714
    %v641 = vadd.f32 %v615, 14.285714
    %v642 = vadd.f32 %v617, 14.285714
    %v643 = vadd.f32 %v619, 14.285714
    %v644 = vadd.f32 %v621, 14.285714
    %v645 = vadd.f32 %v623, 14.285714
    %v646 = vadd.f32 %v625, 14.285714
    %v647 = vadd.f32 %v627, 14.285714
    %v648 = vadd.f32 %v629, 14.285714
    %v649 = vadd.f32 %v631, 14.285714
    %v650 = vadd.f32 %v633, 14.285714
    %v651 = vadd.f32 %v635, 14.285714
    %v652 = vmul.f32 %v341, 2.0
    %v653 = vmul.f32 %v343, 2.0
    %v654 = vmul.f32 %v345, 2.0
    %v655 = vmul.f32 %v347, 2.0
    %v656 = vmul.f32 %v349, 2.0
    %v657 = vmul.f32 %v351, 2.0
    %v658 = vmul.f32 %v353, 2.0
    %v659 = vmul.f32 %v355, 2.0
    %v660 = vmul.f32 %v357, 2.0
    %v661 = vmul.f32 %v359, 2.0
    %v662 = vmul.f32 %v361, 2.0
    %v663 = vmul.f32 %v363, 2.0
    %v664 = vmul.f32 %v365, 2.0
    %v665 = vmul.f32 %v367, 2.0
    %v666 = vmul.f32 %v369, 2.0
    %v667 = vmul.f32 %v371, 2.0
    %v668 = vsub.f32 %v636, %v652
    %v669 = vsub.f32 %v637, %v653
    %v670 = vsub.f32 %v638, %v654
    %v671 = vsub.f32 %v639, %v655
    %v672 = vsub.f32 %v640, %v656
    %v673 = vsub.f32 %v641, %v657
    %v674 = vsub.f32 %v642, %v658
    %v675 = vsub.f32 %v643, %v659
    %v676 = vsub.f32 %v644, %v660
    %v677 = vsub.f32 %v645, %v661
    %v678 = vsub.f32 %v646, %v662
    %v679 = vsub.f32 %v647, %v663
    %v680 = vsub.f32 %v648, %v664
    %v681 = vsub.f32 %v649, %v665
    %v682 = vsub.f32 %v650, %v666
    %v683 = vsub.f32 %v651, %v667
    %p684 = scmp.lt.s32.totalorder 0, 0
    // Predicated region
    $region18: #{tpu_custom_call.1} parent=1 // pred_check
      %p685 = pneg %p684
    $region19: #{tpu_custom_call.1} parent=1 // pred_check_branch
      %687 = sbr.rel (%p685) target = $region21
    $region20: #{tpu_custom_call.1} parent=1 // pred_region
      %v688 = vld [vmem:[#allocation6] sm:$0x1]
      %v689 = vadd.f32 %v668, %v669
      %v690 = vadd.f32 %v689, %v670
      %v691 = vadd.f32 %v690, %v671
      %v692 = vadd.f32 %v691, %v672
      %v693 = vadd.f32 %v692, %v673
      %v694 = vadd.f32 %v693, %v674
      %v695 = vadd.f32 %v694, %v675
      %v696 = vadd.f32 %v695, %v676
      %v697 = vadd.f32 %v696, %v677
      %v698 = vadd.f32 %v697, %v678
      %v699 = vadd.f32 %v698, %v679
      %v700 = vadd.f32 %v699, %v680
      %v701 = vadd.f32 %v700, %v681
      %v702 = vadd.f32 %v701, %v682
      %v703 = vadd.f32 %v702, %v683
      %v704 = vrot.slane %v703, 4
      %v705 = vadd.f32 %v703, %v704
      %v706 = vrot.slane %v705, 2
      %v707 = vadd.f32 %v705, %v706
      %v708 = vrot.slane %v707, 1
      %v709 = vadd.f32 %v707, %v708
      %v710 = vadd.f32 %v688, %v709
      %vm711 = vcmask 0
      %712 = vst.msk [vmem:[#allocation6] sm:$0x1] %vm711, %v710
      %v713 = vld [vmem:[#allocation5] sm:$0x1]
      %v714 = vadd.f32 %v541, %v543
      %v715 = vadd.f32 %v714, %v545
      %v716 = vadd.f32 %v715, %v547
      %v717 = vadd.f32 %v716, %v549
      %v718 = vadd.f32 %v717, %v551
      %v719 = vadd.f32 %v718, %v553
      %v720 = vadd.f32 %v719, %v555
      %v721 = vadd.f32 %v720, %v557
      %v722 = vadd.f32 %v721, %v559
      %v723 = vadd.f32 %v722, %v561
      %v724 = vadd.f32 %v723, %v563
      %v725 = vadd.f32 %v724, %v565
      %v726 = vadd.f32 %v725, %v567
      %v727 = vadd.f32 %v726, %v569
      %v728 = vadd.f32 %v727, %v571
      %v729 = vrot.slane %v728, 4
      %v730 = vadd.f32 %v728, %v729
      %v731 = vrot.slane %v730, 2
      %v732 = vadd.f32 %v730, %v731
      %v733 = vrot.slane %v732, 1
      %v734 = vadd.f32 %v732, %v733
      %v735 = vadd.f32 %v713, %v734
      %736 = vst [vmem:[#allocation5] sm:$0x1] %v735
    $region21: #{tpu_custom_call.1} parent=1 // pred_fallthru
      _
    // Predicated region
    $region22: #{tpu_custom_call.1} parent=1 // pred_check
      %p737 = pneg %p24
    $region23: #{tpu_custom_call.1} parent=1 // pred_check_branch
      %739 = sbr.rel (%p737) target = $region25
    $region24: #{tpu_custom_call.1} parent=1 // pred_region
      %v740 = vlaneseq
      %v741 = vshrl.u32 %v740, 7
      %v742 = vadd.s32 %v741, 8
      %v743 = vadd.s32 %v741, 16
      %v744 = vadd.s32 %v741, 24
      %v745 = vadd.s32 %v741, 32
      %v746 = vadd.s32 %v741, 40
      %v747 = vadd.s32 %v741, 48
      %v748 = vadd.s32 %v741, 56
      %v749 = vadd.s32 %v741, 64
      %v750 = vadd.s32 %v741, 72
      %v751 = vadd.s32 %v741, 80
      %v752 = vadd.s32 %v741, 88
      %v753 = vadd.s32 %v741, 96
      %v754 = vadd.s32 %v741, 104
      %v755 = vadd.s32 %v741, 112
      %v756 = vadd.s32 %v741, 120
      %v757 = vstv %s306
      %v758 = vadd.s32 %v757, %v741
      %v759 = vadd.s32 %v757, %v742
      %v760 = vadd.s32 %v757, %v743
      %v761 = vadd.s32 %v757, %v744
      %v762 = vadd.s32 %v757, %v745
      %v763 = vadd.s32 %v757, %v746
      %v764 = vadd.s32 %v757, %v747
      %v765 = vadd.s32 %v757, %v748
      %v766 = vadd.s32 %v757, %v749
      %v767 = vadd.s32 %v757, %v750
      %v768 = vadd.s32 %v757, %v751
      %v769 = vadd.s32 %v757, %v752
      %v770 = vadd.s32 %v757, %v753
      %v771 = vadd.s32 %v757, %v754
      %v772 = vadd.s32 %v757, %v755
      %v773 = vadd.s32 %v757, %v756
      %vm774 = vcmp.lt.s32.totalorder %v758, 8
      %vm775 = vcmp.lt.s32.totalorder %v759, 8
      %vm776 = vcmp.lt.s32.totalorder %v760, 8
      %vm777 = vcmp.lt.s32.totalorder %v761, 8
      %vm778 = vcmp.lt.s32.totalorder %v762, 8
      %vm779 = vcmp.lt.s32.totalorder %v763, 8
      %vm780 = vcmp.lt.s32.totalorder %v764, 8
      %vm781 = vcmp.lt.s32.totalorder %v765, 8
      %vm782 = vcmp.lt.s32.totalorder %v766, 8
      %vm783 = vcmp.lt.s32.totalorder %v767, 8
      %vm784 = vcmp.lt.s32.totalorder %v768, 8
      %vm785 = vcmp.lt.s32.totalorder %v769, 8
      %vm786 = vcmp.lt.s32.totalorder %v770, 8
      %vm787 = vcmp.lt.s32.totalorder %v771, 8
      %vm788 = vcmp.lt.s32.totalorder %v772, 8
      %vm789 = vcmp.lt.s32.totalorder %v773, 8
      %v790 = vld [vmem:[#allocation6] sm:$0x1]
      %v791 = vsel %vm774, %v668, 0.0
      %v792 = vsel %vm775, %v669, 0.0
      %v793 = vsel %vm776, %v670, 0.0
      %v794 = vsel %vm777, %v671, 0.0
      %v795 = vsel %vm778, %v672, 0.0
      %v796 = vsel %vm779, %v673, 0.0
      %v797 = vsel %vm780, %v674, 0.0
      %v798 = vsel %vm781, %v675, 0.0
      %v799 = vsel %vm782, %v676, 0.0
      %v800 = vsel %vm783, %v677, 0.0
      %v801 = vsel %vm784, %v678, 0.0
      %v802 = vsel %vm785, %v679, 0.0
      %v803 = vsel %vm786, %v680, 0.0
      %v804 = vsel %vm787, %v681, 0.0
      %v805 = vsel %vm788, %v682, 0.0
      %v806 = vsel %vm789, %v683, 0.0
      %v807 = vadd.f32 %v791, %v792
      %v808 = vadd.f32 %v807, %v793
      %v809 = vadd.f32 %v808, %v794
      %v810 = vadd.f32 %v809, %v795
      %v811 = vadd.f32 %v810, %v796
      %v812 = vadd.f32 %v811, %v797
      %v813 = vadd.f32 %v812, %v798
      %v814 = vadd.f32 %v813, %v799
      %v815 = vadd.f32 %v814, %v800
      %v816 = vadd.f32 %v815, %v801
      %v817 = vadd.f32 %v816, %v802
      %v818 = vadd.f32 %v817, %v803
      %v819 = vadd.f32 %v818, %v804
      %v820 = vadd.f32 %v819, %v805
      %v821 = vadd.f32 %v820, %v806
      %v822 = vrot.slane %v821, 4
      %v823 = vadd.f32 %v821, %v822
      %v824 = vrot.slane %v823, 2
      %v825 = vadd.f32 %v823, %v824
      %v826 = vrot.slane %v825, 1
      %v827 = vadd.f32 %v825, %v826
      %v828 = vadd.f32 %v790, %v827
      %vm829 = vcmask 0
      %830 = vst.msk [vmem:[#allocation6] sm:$0x1] %vm829, %v828
      %v831 = vld [vmem:[#allocation5] sm:$0x1]
      %v832 = vsel %vm774, 1, 0
      %v833 = vsel %vm775, 1, 0
      %v834 = vsel %vm776, 1, 0
      %v835 = vsel %vm777, 1, 0
      %v836 = vsel %vm778, 1, 0
      %v837 = vsel %vm779, 1, 0
      %v838 = vsel %vm780, 1, 0
      %v839 = vsel %vm781, 1, 0
      %v840 = vsel %vm782, 1, 0
      %v841 = vsel %vm783, 1, 0
      %v842 = vsel %vm784, 1, 0
      %v843 = vsel %vm785, 1, 0
      %v844 = vsel %vm786, 1, 0
      %v845 = vsel %vm787, 1, 0
      %v846 = vsel %vm788, 1, 0
      %v847 = vsel %vm789, 1, 0
      %vm848 = vcmp.eq.s32.totalorder %v832, 1
      %vm849 = vcmp.eq.s32.totalorder %v833, 1
      %vm850 = vcmp.eq.s32.totalorder %v834, 1
      %vm851 = vcmp.eq.s32.totalorder %v835, 1
      %vm852 = vcmp.eq.s32.totalorder %v836, 1
      %vm853 = vcmp.eq.s32.totalorder %v837, 1
      %vm854 = vcmp.eq.s32.totalorder %v838, 1
      %vm855 = vcmp.eq.s32.totalorder %v839, 1
      %vm856 = vcmp.eq.s32.totalorder %v840, 1
      %vm857 = vcmp.eq.s32.totalorder %v841, 1
      %vm858 = vcmp.eq.s32.totalorder %v842, 1
      %vm859 = vcmp.eq.s32.totalorder %v843, 1
      %vm860 = vcmp.eq.s32.totalorder %v844, 1
      %vm861 = vcmp.eq.s32.totalorder %v845, 1
      %vm862 = vcmp.eq.s32.totalorder %v846, 1
      %vm863 = vcmp.eq.s32.totalorder %v847, 1
      %v864 = vsel %vm848, %v541, 0.0
      %v865 = vsel %vm849, %v543, 0.0
      %v866 = vsel %vm850, %v545, 0.0
      %v867 = vsel %vm851, %v547, 0.0
      %v868 = vsel %vm852, %v549, 0.0
      %v869 = vsel %vm853, %v551, 0.0
      %v870 = vsel %vm854, %v553, 0.0
      %v871 = vsel %vm855, %v555, 0.0
      %v872 = vsel %vm856, %v557, 0.0
      %v873 = vsel %vm857, %v559, 0.0
      %v874 = vsel %vm858, %v561, 0.0
      %v875 = vsel %vm859, %v563, 0.0
      %v876 = vsel %vm860, %v565, 0.0
      %v877 = vsel %vm861, %v567, 0.0
      %v878 = vsel %vm862, %v569, 0.0
      %v879 = vsel %vm863, %v571, 0.0
      %v880 = vadd.f32 %v864, %v865
      %v881 = vadd.f32 %v880, %v866
      %v882 = vadd.f32 %v881, %v867
      %v883 = vadd.f32 %v882, %v868
      %v884 = vadd.f32 %v883, %v869
      %v885 = vadd.f32 %v884, %v870
      %v886 = vadd.f32 %v885, %v871
      %v887 = vadd.f32 %v886, %v872
      %v888 = vadd.f32 %v887, %v873
      %v889 = vadd.f32 %v888, %v874
      %v890 = vadd.f32 %v889, %v875
      %v891 = vadd.f32 %v890, %v876
      %v892 = vadd.f32 %v891, %v877
      %v893 = vadd.f32 %v892, %v878
      %v894 = vadd.f32 %v893, %v879
      %v895 = vrot.slane %v894, 4
      %v896 = vadd.f32 %v894, %v895
      %v897 = vrot.slane %v896, 2
      %v898 = vadd.f32 %v896, %v897
      %v899 = vrot.slane %v898, 1
      %v900 = vadd.f32 %v898, %v899
      %v901 = vadd.f32 %v831, %v900
      %902 = vst [vmem:[#allocation5] sm:$0x1] %v901
      %v903 = vld [vmem:[#allocation5] sm:$0x1]
      %v904 = vlog2.pop %v903
      %v905 = vmul.f32 %v904, 0.6931472
      %v906 = vadd.f32 %v905, 14.285714
      %v907 = vlaneseq
      %v908 = vand.u32 %v907, 127
      %vm909 = vcmp.lt.s32.totalorder %v908, 8
      %v910 = vsel %vm909, %v906, 0.0
      %vm911 = vcmask 1040384
      %v912 = vsel %vm911, %v910, 0.0
      %913 = vadd.xlane.f32.xlu0 %v912
      %v914 = vpop.xlane.xlu0 %913
      %v915 = vld [vmem:[#allocation6] sm:$0x1]
      %v916 = vadd.f32 %v915, %v914
      %v917 = vmul.f32 %v916, 0.0625
      %918 = vst.msk [vmem:[#allocation11] sm:$0x1] %vm829, %v917
    $region25: #{tpu_custom_call.1} parent=1 // pred_fallthru
      _
    // Predicated region
    $region26: #{tpu_custom_call.1} parent=1 // pred_check
      _
    $region27: #{tpu_custom_call.1} parent=1 // pred_check_branch
      %920 = sbr.rel (0) target = $region29
    $region28: #{tpu_custom_call.1} parent=1 // pred_region
      %s922 = ssub.s32 16, 16
      %923 = vsyncadd [#allocation10], %s922
      %s925 = sshll.u32 [#allocation11], 4
      %s926 = int_to_ptr.vmem [resolvable:$true] %s925
      %928 = dma.vmem_to_hbm [thread:$0]  %s926, 16, %s2, [#allocation10]
    $region29: #{tpu_custom_call.1} parent=1 // pred_fallthru
      _
    // Predicated region
    $region30: #{tpu_custom_call.1} parent=1 // pred_check
      _
    $region31: #{tpu_custom_call.1} parent=1 // pred_check_branch
      %930 = sbr.rel (0) target = $region33
    $region32: #{tpu_custom_call.1} parent=1 // pred_region
      %931 = dma.done [#allocation10], 16
    $region33: #{tpu_custom_call.1} parent=1 // pred_fallthru
      _
    %932 = vsyncpa [#allocation9], 1
    %933 = vsyncpa [#allocation10], 1
  %934 = vsyncmov [#allocation7]
  %s935 = vpop.sfrf %934
  %p936 = scmp.eq.s32.totalorder %s935, 0
  %p937 = pneg %p936
  %939 = shalt.err (%p937)

</llo_original>
